<compile_context>
chip_gen: v6e
topology: v6e:2x2x1
jax: 0.10.0
libtpu: 0.0.40
codegen_flags: <defaults>
</compile_context>

<pallas_src>
import functools

import jax
import jax.numpy as jnp
from jax.experimental import pallas as pl
from jax.experimental.pallas import tpu as pltpu

_LANE = 128


def _round_up(x, m):
    return (x + m - 1) // m * m


def critic_kernel(x_ref, w1_ref, b1_ref, w2_ref, b2_ref, w3_ref, b3_ref, o_ref):
    x = x_ref[...]                                                        # (d_in, TB)

    # layer 1: single fused matmul (concat folded into the packed input)
    h1 = jnp.dot(w1_ref[...], x, preferred_element_type=jnp.float32)     # (H, TB)
    h1 = jnp.maximum(h1 + b1_ref[...], 0.0)

    # layer 2
    h2 = jnp.dot(w2_ref[...], h1, preferred_element_type=jnp.float32)    # (H, TB)
    h2 = jnp.maximum(h2 + b2_ref[...], 0.0)

    # layer 3: (H, TB) contracted against the (H, 1) w3 column — VPU mul + XLU
    # sublane reduce instead of an M=1 MXU matmul.
    q = jnp.sum(h2 * w3_ref[...], axis=0, keepdims=True)                 # (1, TB)
    o_ref[...] = (q + b3_ref[0, 0]).astype(o_ref.dtype)


@functools.partial(jax.jit, static_argnames=("max_tb",))
def critic_forward(state, action, params, *, max_tb=1024):
    """state: (B, num_inputs), action: (B, num_actions) -> (B,) float32."""
    w1, b1, w2, b2, w3, b3 = params                  # torch (out, in) layouts
    B, ni = state.shape
    na = action.shape[1]
    d_in = ni + na
    H = w1.shape[0]

    # Batch lives on the lane axis: pad only to the 128-lane granularity.
    b_pad = _round_up(B, _LANE)
    if b_pad <= max_tb:
        tb = b_pad                                   # single tile, grid=(1,)
    else:                                            # multi-tile: minimize padding
        n_tiles = -(-B // max_tb)
        tb = _round_up(-(-B // n_tiles), _LANE)
        b_pad = n_tiles * tb
    grid = (b_pad // tb,)

    # Pack [state | action] once, pad the batch, flip to feature-major.
    x = jnp.concatenate([state, action], axis=1)     # (B, d_in)
    x = jnp.pad(x, ((0, b_pad - B), (0, 0))).T       # (d_in, b_pad)

    resident = lambda shape: pl.BlockSpec(shape, lambda i: (0, 0))  # loaded once

    out = pl.pallas_call(
        critic_kernel,
        out_shape=jax.ShapeDtypeStruct((1, b_pad), jnp.float32),
        grid=grid,
        in_specs=[
            pl.BlockSpec((d_in, tb), lambda i: (0, i)),           # packed input tile
            resident((H, d_in)),                                  # W1 (out, in)
            resident((H, 1)),                                     # b1 column
            resident((H, H)),                                     # W2 (out, in)
            resident((H, 1)),                                     # b2 column
            resident((H, 1)),                                     # w3 column
            pl.BlockSpec(memory_space=pltpu.MemorySpace.SMEM),    # b3 scalar
        ],
        out_specs=pl.BlockSpec((1, tb), lambda i: (0, i)),        # lane-dense output
        compiler_params=pltpu.CompilerParams(
            dimension_semantics=("parallel",)),
    )(x, w1, b1, w2, b2, w3, b3)

    return out[0, :B]                                             # (B,)


def init_params(key, num_inputs, num_actions, hidden_dim):
    """Deterministic init mimicking nn.Linear's U(-1/sqrt(fan_in), 1/sqrt(fan_in)).

    Weights are kept in the torch (out_features, in_features) layout, biases as
    (out_features, 1) columns — the layouts the feature-major kernel consumes.
    """
    d_in = num_inputs + num_actions
    ks = jax.random.split(key, 6)

    def lin(kw, kb, fan_in, fan_out):
        bound = 1.0 / jnp.sqrt(jnp.float32(fan_in))
        w = jax.random.uniform(kw, (fan_out, fan_in), jnp.float32, -bound, bound)
        b = jax.random.uniform(kb, (fan_out, 1), jnp.float32, -bound, bound)
        return w, b

    w1, b1 = lin(ks[0], ks[1], d_in, hidden_dim)          # (H, d_in), (H, 1)
    w2, b2 = lin(ks[2], ks[3], hidden_dim, hidden_dim)    # (H, H),    (H, 1)
    w3r, b3 = lin(ks[4], ks[5], hidden_dim, 1)            # (1, H),    (1, 1)
    w3 = w3r.T                                            # (H, 1) column
    return (w1, b1, w2, b2, w3, b3)


if __name__ == "__main__":
    num_inputs, num_actions, hidden_dim = 12, 4, 32
    batch = 300   # non-multiple of 128: exercises the lane padding + output slice

    key = jax.random.PRNGKey(0)
    k_s, k_a, k_p = jax.random.split(key, 3)

    state = jax.random.normal(k_s, (batch, num_inputs), jnp.float32)
    action = jax.random.normal(k_a, (batch, num_actions), jnp.float32)
    params = init_params(k_p, num_inputs, num_actions, hidden_dim)

    q = critic_forward(state, action, params)
    jax.block_until_ready(q)

    # pure-JAX reference of the same forward pass
    w1, b1, w2, b2, w3, b3 = params
    x = jnp.concatenate([state, action], axis=1)
    h1 = jnp.maximum(x @ w1.T + b1[:, 0], 0.0)
    h2 = jnp.maximum(h1 @ w2.T + b2[:, 0], 0.0)
    q_ref = h2 @ w3[:, 0] + b3[0, 0]

    assert q.shape == (batch,)
    assert jnp.allclose(q, q_ref, atol=1e-4, rtol=1e-4)

    print("KERNEL_OK")
</pallas_src>

<mosaic_0001>
module attributes {stable_mosaic.version = 11 : i64} {
  func.func @critic_kernel(%arg0: i32, %arg1: memref<16x384xf32, #tpu.memory_space<vmem>>, %arg2: memref<32x16xf32, #tpu.memory_space<vmem>>, %arg3: memref<32x1xf32, #tpu.memory_space<vmem>>, %arg4: memref<32x32xf32, #tpu.memory_space<vmem>>, %arg5: memref<32x1xf32, #tpu.memory_space<vmem>>, %arg6: memref<32x1xf32, #tpu.memory_space<vmem>>, %arg7: memref<1x1xf32, #tpu.memory_space<smem>>, %arg8: memref<1x384xf32, #tpu.memory_space<vmem>>) attributes {dimension_semantics = [#tpu.dimension_semantics<parallel>], iteration_bounds = array<i64: 1>, scalar_prefetch = 0 : i64, scratch_operands = 0 : i64, tpu.core_type = #tpu.core_type<tc>, window_params = [{transform_indices = @transform_0, window_bounds = array<i64: 16, 384>}, {pipeline_mode = #tpu.pipeline_mode<synchronous>, transform_indices = @transform_1, window_bounds = array<i64: 32, 16>}, {pipeline_mode = #tpu.pipeline_mode<synchronous>, transform_indices = @transform_2, window_bounds = array<i64: 32, 1>}, {pipeline_mode = #tpu.pipeline_mode<synchronous>, transform_indices = @transform_3, window_bounds = array<i64: 32, 32>}, {pipeline_mode = #tpu.pipeline_mode<synchronous>, transform_indices = @transform_4, window_bounds = array<i64: 32, 1>}, {pipeline_mode = #tpu.pipeline_mode<synchronous>, transform_indices = @transform_5, window_bounds = array<i64: 32, 1>}, {transform_indices = @transform_6, window_bounds = array<i64: 1, 1>}, {transform_indices = @transform_7, window_bounds = array<i64: 1, 384>}]} {
    %c0 = arith.constant 0 : index
    %c0_0 = arith.constant 0 : index
    %0 = vector.load %arg1[%c0, %c0_0] : memref<16x384xf32, #tpu.memory_space<vmem>>, vector<16x384xf32>
    %c0_1 = arith.constant 0 : index
    %c0_2 = arith.constant 0 : index
    %1 = vector.load %arg2[%c0_1, %c0_2] : memref<32x16xf32, #tpu.memory_space<vmem>>, vector<32x16xf32>
    %cst = arith.constant dense<0.000000e+00> : vector<32x384xf32>
    %2 = tpu.matmul %1, %0, %cst {dimension_numbers = #tpu.dot_dimension_numbers<[1], [0], [0], [1], [0, 0, 1, 1], [], []>} : vector<32x16xf32>, vector<16x384xf32>, vector<32x384xf32> -> vector<32x384xf32>
    %c0_3 = arith.constant 0 : index
    %c0_4 = arith.constant 0 : index
    %3 = vector.load %arg3[%c0_3, %c0_4] : memref<32x1xf32, #tpu.memory_space<vmem>>, vector<32x1xf32>
    %4 = vector.broadcast %3 : vector<32x1xf32> to vector<32x384xf32>
    %5 = arith.addf %2, %4 : vector<32x384xf32>
    %cst_5 = arith.constant 0.000000e+00 : f32
    %6 = vector.broadcast %cst_5 : f32 to vector<32x384xf32>
    %7 = arith.maximumf %5, %6 : vector<32x384xf32>
    %c0_6 = arith.constant 0 : index
    %c0_7 = arith.constant 0 : index
    %8 = vector.load %arg4[%c0_6, %c0_7] : memref<32x32xf32, #tpu.memory_space<vmem>>, vector<32x32xf32>
    %cst_8 = arith.constant dense<0.000000e+00> : vector<32x384xf32>
    %9 = tpu.matmul %8, %7, %cst_8 {dimension_numbers = #tpu.dot_dimension_numbers<[1], [0], [0], [1], [0, 0, 1, 1], [], []>} : vector<32x32xf32>, vector<32x384xf32>, vector<32x384xf32> -> vector<32x384xf32>
    %c0_9 = arith.constant 0 : index
    %c0_10 = arith.constant 0 : index
    %10 = vector.load %arg5[%c0_9, %c0_10] : memref<32x1xf32, #tpu.memory_space<vmem>>, vector<32x1xf32>
    %11 = vector.broadcast %10 : vector<32x1xf32> to vector<32x384xf32>
    %12 = arith.addf %9, %11 : vector<32x384xf32>
    %cst_11 = arith.constant 0.000000e+00 : f32
    %13 = vector.broadcast %cst_11 : f32 to vector<32x384xf32>
    %14 = arith.maximumf %12, %13 : vector<32x384xf32>
    %c0_12 = arith.constant 0 : index
    %c0_13 = arith.constant 0 : index
    %15 = vector.load %arg6[%c0_12, %c0_13] : memref<32x1xf32, #tpu.memory_space<vmem>>, vector<32x1xf32>
    %16 = vector.broadcast %15 : vector<32x1xf32> to vector<32x384xf32>
    %17 = arith.mulf %14, %16 : vector<32x384xf32>
    %cst_14 = arith.constant dense<0.000000e+00> : vector<384xf32>
    %18 = vector.multi_reduction <add>, %17, %cst_14 [0] : vector<32x384xf32> to vector<384xf32>
    %19 = vector.shape_cast %18 : vector<384xf32> to vector<1x384xf32>
    %c0_15 = arith.constant 0 : index
    %c0_16 = arith.constant 0 : index
    %20 = memref.load %arg7[%c0_15, %c0_16] : memref<1x1xf32, #tpu.memory_space<smem>>
    %21 = vector.broadcast %20 : f32 to vector<1x384xf32>
    %22 = arith.addf %19, %21 : vector<1x384xf32>
    %c0_17 = arith.constant 0 : index
    %c0_18 = arith.constant 0 : index
    %23 = vector.load %arg8[%c0_17, %c0_18] : memref<1x384xf32, #tpu.memory_space<vmem>>, vector<1x384xf32>
    tpu.vector_store %arg8[%c0_17, %c0_18], %22 {strides = array<i32>} : memref<1x384xf32, #tpu.memory_space<vmem>>, vector<1x384xf32>,
    return
  }
  func.func @transform_0(%arg0: i32) -> (i32, i32) {
    %c0_i32 = arith.constant 0 : i32
    %c0_i32_0 = arith.constant 0 : i32
    return %c0_i32, %arg0 : i32, i32
  }
  func.func @transform_1(%arg0: i32) -> (i32, i32) {
    %c0_i32 = arith.constant 0 : i32
    %c0_i32_0 = arith.constant 0 : i32
    %c0_i32_1 = arith.constant 0 : i32
    return %c0_i32, %c0_i32_0 : i32, i32
  }
  func.func @transform_2(%arg0: i32) -> (i32, i32) {
    %c0_i32 = arith.constant 0 : i32
    %c0_i32_0 = arith.constant 0 : i32
    %c0_i32_1 = arith.constant 0 : i32
    return %c0_i32, %c0_i32_0 : i32, i32
  }
  func.func @transform_3(%arg0: i32) -> (i32, i32) {
    %c0_i32 = arith.constant 0 : i32
    %c0_i32_0 = arith.constant 0 : i32
    %c0_i32_1 = arith.constant 0 : i32
    return %c0_i32, %c0_i32_0 : i32, i32
  }
  func.func @transform_4(%arg0: i32) -> (i32, i32) {
    %c0_i32 = arith.constant 0 : i32
    %c0_i32_0 = arith.constant 0 : i32
    %c0_i32_1 = arith.constant 0 : i32
    return %c0_i32, %c0_i32_0 : i32, i32
  }
  func.func @transform_5(%arg0: i32) -> (i32, i32) {
    %c0_i32 = arith.constant 0 : i32
    %c0_i32_0 = arith.constant 0 : i32
    %c0_i32_1 = arith.constant 0 : i32
    return %c0_i32, %c0_i32_0 : i32, i32
  }
  func.func @transform_6(%arg0: i32) -> (i32, i32) {
    %c0_i32 = arith.constant 0 : i32
    %c0_i32_0 = arith.constant 0 : i32
    %c0_i32_1 = arith.constant 0 : i32
    return %c0_i32, %c0_i32_0 : i32, i32
  }
  func.func @transform_7(%arg0: i32) -> (i32, i32) {
    %c0_i32 = arith.constant 0 : i32
    %c0_i32_0 = arith.constant 0 : i32
    return %c0_i32, %arg0 : i32, i32
  }
}

</mosaic_0001>

<llo_original>
// kernel: critic_forward.1
$region0: #{critic_forward.1}
  #allocation0 [shape = 'u32[]', space=smem, size = 0x4, offset = 0x4, fixed_abs, tag = 'smem constant byte address 0x4 - core index']
  #allocation1 [shape = 'u32[144,128]{1,0:T(1,128)}', space=vmem, size = 0x12000, scoped, tag = 'internal scratch']
  #allocation2 [shape = 'f32[1,1]{1,0:T(1,128)S(6)}', space=smem, size = 0x200, scoped, tag = 'scoped memory for critic_forward.1']
  %s0 = inlined_call_operand.vmem [shape: f32[16,384], index: 0, kind: input, shape index: {}]
  %s1 = inlined_call_operand.vmem [shape: f32[32,16], index: 1, kind: input, shape index: {}]
  %s2 = inlined_call_operand.vmem [shape: f32[32,1], index: 2, kind: input, shape index: {}]
  %s3 = inlined_call_operand.vmem [shape: f32[32,32], index: 3, kind: input, shape index: {}]
  %s4 = inlined_call_operand.vmem [shape: f32[32,1], index: 4, kind: input, shape index: {}]
  %s5 = inlined_call_operand.vmem [shape: f32[32,1], index: 5, kind: input, shape index: {}]
  %s6 = inlined_call_operand.<no memory space> [shape: f32[1,1], index: 6, kind: input, shape index: {}]
  %s7 = inlined_call_operand.vmem [shape: f32[1,384], index: 7, kind: output, shape index: {}]
  %s8 = sld [smem:[#allocation0]]
  $region38: #{critic_forward.1} parent=0
    _
  %s10 = ssub.s32 1, %s8
  %s11 = scalar_select 0, %s10, %s8
  %12 = sst [smem:[#allocation2]] %s6
  // Predicated region
  $region2: #{critic_forward.1} parent=0 // pred_check
    _
  $region3: #{critic_forward.1} parent=0 // pred_check_branch
    %14 = sbr.rel (0) target = $region5
  $region4: #{critic_forward.1} parent=0 // pred_region
    _
  $region5: #{critic_forward.1} parent=0 // pred_fallthru
    _
  // Predicated region
  $region6: #{critic_forward.1} parent=0 // pred_check
    _
  $region7: #{critic_forward.1} parent=0 // pred_check_branch
    %16 = sbr.rel (0) target = $region9
  $region8: #{critic_forward.1} parent=0 // pred_region
    _
  $region9: #{critic_forward.1} parent=0 // pred_fallthru
    _
  // Predicated region
  $region10: #{critic_forward.1} parent=0 // pred_check
    _
  $region11: #{critic_forward.1} parent=0 // pred_check_branch
    %18 = sbr.rel (0) target = $region13
  $region12: #{critic_forward.1} parent=0 // pred_region
    _
  $region13: #{critic_forward.1} parent=0 // pred_fallthru
    _
  // Predicated region
  $region14: #{critic_forward.1} parent=0 // pred_check
    _
  $region15: #{critic_forward.1} parent=0 // pred_check_branch
    %20 = sbr.rel (0) target = $region17
  $region16: #{critic_forward.1} parent=0 // pred_region
    _
  $region17: #{critic_forward.1} parent=0 // pred_fallthru
    _
  // Predicated region
  $region18: #{critic_forward.1} parent=0 // pred_check
    _
  $region19: #{critic_forward.1} parent=0 // pred_check_branch
    %22 = sbr.rel (0) target = $region21
  $region20: #{critic_forward.1} parent=0 // pred_region
    _
  $region21: #{critic_forward.1} parent=0 // pred_fallthru
    _
  // Predicated region
  $region22: #{critic_forward.1} parent=0 // pred_check
    _
  $region23: #{critic_forward.1} parent=0 // pred_check_branch
    %24 = sbr.rel (0) target = $region25
  $region24: #{critic_forward.1} parent=0 // pred_region
    _
  $region25: #{critic_forward.1} parent=0 // pred_fallthru
    _
  // Predicated region
  $region26: #{critic_forward.1} parent=0 // pred_check
    _
  $region27: #{critic_forward.1} parent=0 // pred_check_branch
    %26 = sbr.rel (0) target = $region29
  $region28: #{critic_forward.1} parent=0 // pred_region
    _
  $region29: #{critic_forward.1} parent=0 // pred_fallthru
    _
  %v27 = vld [vmem:[%s0] sm:$0xff]
  %v28 = vld [vmem:[%s0 + $0x8] sm:$0xff]
  %v29 = vld [vmem:[%s0 + $0x10] sm:$0xff]
  %v30 = vld [vmem:[%s0 + $0x18] sm:$0xff]
  %v31 = vld [vmem:[%s0 + $0x20] sm:$0xff]
  %v32 = vld [vmem:[%s0 + $0x28] sm:$0xff]
  %v33 = vld [vmem:[%s1] sm:$0xff]
  %v34 = vld [vmem:[%s1 + $0x8] sm:$0xff]
  %v35 = vld [vmem:[%s1 + $0x10] sm:$0xff]
  %v36 = vld [vmem:[%s1 + $0x18] sm:$0xff]
  %v37 = vld [vmem:[%s2] sm:$0xff]
  %v38 = vld [vmem:[%s2 + $0x8] sm:$0xff]
  %v39 = vld [vmem:[%s2 + $0x10] sm:$0xff]
  %v40 = vld [vmem:[%s2 + $0x18] sm:$0xff]
  %42 = vset.pattern.permute.xlu0 0
  %43 = vperm.xlu0 %42, %v37
  %v44 = vpop.permute.xlu0 %43
  %47 = vset.pattern.permute.xlu0 0
  %48 = vperm.xlu0 %47, %v38
  %v49 = vpop.permute.xlu0 %48
  %52 = vset.pattern.permute.xlu0 0
  %53 = vperm.xlu0 %52, %v39
  %v54 = vpop.permute.xlu0 %53
  %57 = vset.pattern.permute.xlu0 0
  %58 = vperm.xlu0 %57, %v40
  %v59 = vpop.permute.xlu0 %58
  %vm61 = vcmask 130048
  %v63 = vsel %vm61, %v33, 0
  %v66 = vsel %vm61, %v34, 0
  %v69 = vsel %vm61, %v35, 0
  %v72 = vsel %vm61, %v36, 0
  %74 = vmatprep.subr.mxu0 0.0
  %75 = vmatpush1.msra.mxu0 0.0
  %76 = vmatprep.subr.mxu0 0.0
  %77 = vmatpush1.msra.mxu0 0.0
  %78 = vmatprep.subr.mxu0 0.0
  %79 = vmatpush1.msra.mxu0 0.0
  %80 = vmatprep.subr.mxu0 0.0
  %81 = vmatpush1.msra.mxu0 0.0
  %82 = vmatprep.subr.mxu0 0.0
  %83 = vmatpush1.msra.mxu0 0.0
  %84 = vmatprep.subr.mxu0 0.0
  %85 = vmatpush1.msra.mxu0 0.0
  %86 = vmatprep.subr.mxu0 0.0
  %87 = vmatpush1.msra.mxu0 0.0
  %88 = vmatprep.subr.mxu0 0.0
  %89 = vmatpush1.msra.mxu0 0.0
  %90 = vmatprep.subr.mxu0 0.0
  %91 = vmatpush1.msra.mxu0 0.0
  %92 = vmatprep.subr.mxu0 0.0
  %93 = vmatpush1.msra.mxu0 0.0
  %94 = vmatprep.subr.mxu0 0.0
  %95 = vmatpush1.msra.mxu0 0.0
  %96 = vmatprep.subr.mxu0 0.0
  %97 = vmatpush1.msra.mxu0 0.0
  %98 = vmatprep.subr.mxu0 0.0
  %99 = vmatpush1.msra.mxu0 0.0
  %100 = vmatprep.subr.mxu0 0.0
  %101 = vmatpush1.msra.mxu0 0.0
  %102 = vmatprep.subr.mxu0 %v31
  %103 = vmatpush1.msra.mxu0 %v30
  %104 = vmatprep.subr.mxu0 %v28
  %105 = vmatpush1.msra.mxu0 %v27
  %106 = vmatprep.subr.mxu0 0.0
  %107 = vmatpush2.msra.mxu0 0.0
  %108 = vmatprep.subr.mxu0 0.0
  %109 = vmatpush2.msra.mxu0 0.0
  %110 = vmatprep.subr.mxu0 0.0
  %111 = vmatpush2.msra.mxu0 0.0
  %112 = vmatprep.subr.mxu0 0.0
  %113 = vmatpush2.msra.mxu0 0.0
  %114 = vmatprep.subr.mxu0 0.0
  %115 = vmatpush2.msra.mxu0 0.0
  %116 = vmatprep.subr.mxu0 0.0
  %117 = vmatpush2.msra.mxu0 0.0
  %118 = vmatprep.subr.mxu0 0.0
  %119 = vmatpush2.msra.mxu0 0.0
  %120 = vmatprep.subr.mxu0 0.0
  %121 = vmatpush2.msra.mxu0 0.0
  %122 = vmatprep.subr.mxu0 0.0
  %123 = vmatpush2.msra.mxu0 0.0
  %124 = vmatprep.subr.mxu0 0.0
  %125 = vmatpush2.msra.mxu0 0.0
  %126 = vmatprep.subr.mxu0 0.0
  %127 = vmatpush2.msra.mxu0 0.0
  %128 = vmatprep.subr.mxu0 0.0
  %129 = vmatpush2.msra.mxu0 0.0
  %130 = vmatprep.subr.mxu0 0.0
  %131 = vmatpush2.msra.mxu0 0.0
  %132 = vmatprep.subr.mxu0 0.0
  %133 = vmatpush2.msra.mxu0 0.0
  %134 = vmatprep.subr.mxu0 0.0
  %135 = vmatpush2.msra.mxu0 0.0
  %136 = vmatprep.subr.mxu0 0.0
  %137 = vmatpush2.msra.mxu0 0.0
  %138 = vmatprep.mubr.f32.mxu0 0.0
  %139 = vmatmul.mubr.f32.gmra.mxu0 %v63
  %v140 = vpop.f32.mrf.mxu0
  %v141 = vadd.f32 %v44, %v140
  %v142 = vpop.f32.mrf.mxu0
  %v143 = vadd.f32 %v44, %v142
  %144 = vmatprep.mubr.f32.mxu0 0.0
  %145 = vmatmul.mubr.f32.gmra.mxu0 %v66
  %v146 = vpop.f32.mrf.mxu0
  %v147 = vadd.f32 %v49, %v146
  %v148 = vpop.f32.mrf.mxu0
  %v149 = vadd.f32 %v49, %v148
  %150 = vmatprep.mubr.f32.mxu0 0.0
  %151 = vmatmul.mubr.f32.gmra.mxu0 %v69
  %v152 = vpop.f32.mrf.mxu0
  %v153 = vadd.f32 %v54, %v152
  %v154 = vpop.f32.mrf.mxu0
  %v155 = vadd.f32 %v54, %v154
  %156 = vmatprep.mubr.f32.mxu0 0.0
  %157 = vmatmul.mubr.f32.gmra.mxu0 %v72
  %v158 = vpop.f32.mrf.mxu0
  %v159 = vadd.f32 %v59, %v158
  %v160 = vpop.f32.mrf.mxu0
  %v161 = vadd.f32 %v59, %v160
  %162 = vdwg.mxu0
  %163 = vmatprep.subr.mxu0 0.0
  %164 = vmatpush1.msra.mxu0 0.0
  %165 = vmatprep.subr.mxu0 0.0
  %166 = vmatpush1.msra.mxu0 0.0
  %167 = vmatprep.subr.mxu0 0.0
  %168 = vmatpush1.msra.mxu0 0.0
  %169 = vmatprep.subr.mxu0 0.0
  %170 = vmatpush1.msra.mxu0 0.0
  %171 = vmatprep.subr.mxu0 0.0
  %172 = vmatpush1.msra.mxu0 0.0
  %173 = vmatprep.subr.mxu0 0.0
  %174 = vmatpush1.msra.mxu0 0.0
  %175 = vmatprep.subr.mxu0 0.0
  %176 = vmatpush1.msra.mxu0 0.0
  %177 = vmatprep.subr.mxu0 0.0
  %178 = vmatpush1.msra.mxu0 0.0
  %179 = vmatprep.subr.mxu0 0.0
  %180 = vmatpush1.msra.mxu0 0.0
  %181 = vmatprep.subr.mxu0 0.0
  %182 = vmatpush1.msra.mxu0 0.0
  %183 = vmatprep.subr.mxu0 0.0
  %184 = vmatpush1.msra.mxu0 0.0
  %185 = vmatprep.subr.mxu0 0.0
  %186 = vmatpush1.msra.mxu0 0.0
  %187 = vmatprep.subr.mxu0 0.0
  %188 = vmatpush1.msra.mxu0 0.0
  %189 = vmatprep.subr.mxu0 0.0
  %190 = vmatpush1.msra.mxu0 0.0
  %191 = vmatprep.subr.mxu0 0.0
  %192 = vmatpush1.msra.mxu0 %v32
  %193 = vmatprep.subr.mxu0 0.0
  %194 = vmatpush1.msra.mxu0 %v29
  %195 = vmatprep.subr.mxu0 0.0
  %196 = vmatpush2.msra.mxu0 0.0
  %197 = vmatprep.subr.mxu0 0.0
  %198 = vmatpush2.msra.mxu0 0.0
  %199 = vmatprep.subr.mxu0 0.0
  %200 = vmatpush2.msra.mxu0 0.0
  %201 = vmatprep.subr.mxu0 0.0
  %202 = vmatpush2.msra.mxu0 0.0
  %203 = vmatprep.subr.mxu0 0.0
  %204 = vmatpush2.msra.mxu0 0.0
  %205 = vmatprep.subr.mxu0 0.0
  %206 = vmatpush2.msra.mxu0 0.0
  %207 = vmatprep.subr.mxu0 0.0
  %208 = vmatpush2.msra.mxu0 0.0
  %209 = vmatprep.subr.mxu0 0.0
  %210 = vmatpush2.msra.mxu0 0.0
  %211 = vmatprep.subr.mxu0 0.0
  %212 = vmatpush2.msra.mxu0 0.0
  %213 = vmatprep.subr.mxu0 0.0
  %214 = vmatpush2.msra.mxu0 0.0
  %215 = vmatprep.subr.mxu0 0.0
  %216 = vmatpush2.msra.mxu0 0.0
  %217 = vmatprep.subr.mxu0 0.0
  %218 = vmatpush2.msra.mxu0 0.0
  %219 = vmatprep.subr.mxu0 0.0
  %220 = vmatpush2.msra.mxu0 0.0
  %221 = vmatprep.subr.mxu0 0.0
  %222 = vmatpush2.msra.mxu0 0.0
  %223 = vmatprep.subr.mxu0 0.0
  %224 = vmatpush2.msra.mxu0 0.0
  %225 = vmatprep.subr.mxu0 0.0
  %226 = vmatpush2.msra.mxu0 0.0
  %227 = vmatprep.mubr.f32.mxu0 0.0
  %228 = vmatmul.mubr.f32.gmra.mxu0 %v63
  %v229 = vpop.f32.mrf.mxu0
  %v230 = vadd.f32 %v44, %v229
  %v231 = vpop.f32.mrf.mxu0
  %232 = vmatprep.mubr.f32.mxu0 0.0
  %233 = vmatmul.mubr.f32.gmra.mxu0 %v66
  %v234 = vpop.f32.mrf.mxu0
  %v235 = vadd.f32 %v49, %v234
  %v236 = vpop.f32.mrf.mxu0
  %237 = vmatprep.mubr.f32.mxu0 0.0
  %238 = vmatmul.mubr.f32.gmra.mxu0 %v69
  %v239 = vpop.f32.mrf.mxu0
  %v240 = vadd.f32 %v54, %v239
  %v241 = vpop.f32.mrf.mxu0
  %242 = vmatprep.mubr.f32.mxu0 0.0
  %243 = vmatmul.mubr.f32.gmra.mxu0 %v72
  %v244 = vpop.f32.mrf.mxu0
  %v245 = vadd.f32 %v59, %v244
  %v246 = vpop.f32.mrf.mxu0
  %247 = vdwg.mxu0
  %v248 = vmax.f32 %v141, 0.0
  %v249 = vmax.f32 %v143, 0.0
  %v250 = vmax.f32 %v230, 0.0
  %v251 = vmax.f32 %v147, 0.0
  %v252 = vmax.f32 %v149, 0.0
  %v253 = vmax.f32 %v235, 0.0
  %v254 = vmax.f32 %v153, 0.0
  %v255 = vmax.f32 %v155, 0.0
  %v256 = vmax.f32 %v240, 0.0
  %v257 = vmax.f32 %v159, 0.0
  %v258 = vmax.f32 %v161, 0.0
  %v259 = vmax.f32 %v245, 0.0
  %v260 = vld [vmem:[%s3] sm:$0xff]
  %v261 = vld [vmem:[%s3 + $0x8] sm:$0xff]
  %v262 = vld [vmem:[%s3 + $0x10] sm:$0xff]
  %v263 = vld [vmem:[%s3 + $0x18] sm:$0xff]
  %v264 = vld [vmem:[%s4] sm:$0xff]
  %v265 = vld [vmem:[%s4 + $0x8] sm:$0xff]
  %v266 = vld [vmem:[%s4 + $0x10] sm:$0xff]
  %v267 = vld [vmem:[%s4 + $0x18] sm:$0xff]
  %269 = vset.pattern.permute.xlu0 0
  %270 = vperm.xlu0 %269, %v264
  %v271 = vpop.permute.xlu0 %270
  %274 = vset.pattern.permute.xlu0 0
  %275 = vperm.xlu0 %274, %v265
  %v276 = vpop.permute.xlu0 %275
  %279 = vset.pattern.permute.xlu0 0
  %280 = vperm.xlu0 %279, %v266
  %v281 = vpop.permute.xlu0 %280
  %284 = vset.pattern.permute.xlu0 0
  %285 = vperm.xlu0 %284, %v267
  %v286 = vpop.permute.xlu0 %285
  %vm288 = vcmask 261120
  %v290 = vsel %vm288, %v260, 0
  %v293 = vsel %vm288, %v261, 0
  %v296 = vsel %vm288, %v262, 0
  %v299 = vsel %vm288, %v263, 0
  %301 = vmatprep.subr.mxu0 0.0
  %302 = vmatpush1.msra.mxu0 0.0
  %303 = vmatprep.subr.mxu0 0.0
  %304 = vmatpush1.msra.mxu0 0.0
  %305 = vmatprep.subr.mxu0 0.0
  %306 = vmatpush1.msra.mxu0 0.0
  %307 = vmatprep.subr.mxu0 0.0
  %308 = vmatpush1.msra.mxu0 0.0
  %309 = vmatprep.subr.mxu0 0.0
  %310 = vmatpush1.msra.mxu0 0.0
  %311 = vmatprep.subr.mxu0 0.0
  %312 = vmatpush1.msra.mxu0 0.0
  %313 = vmatprep.subr.mxu0 0.0
  %314 = vmatpush1.msra.mxu0 0.0
  %315 = vmatprep.subr.mxu0 0.0
  %316 = vmatpush1.msra.mxu0 0.0
  %317 = vmatprep.subr.mxu0 0.0
  %318 = vmatpush1.msra.mxu0 0.0
  %319 = vmatprep.subr.mxu0 0.0
  %320 = vmatpush1.msra.mxu0 0.0
  %321 = vmatprep.subr.mxu0 0.0
  %322 = vmatpush1.msra.mxu0 0.0
  %323 = vmatprep.subr.mxu0 0.0
  %324 = vmatpush1.msra.mxu0 0.0
  %325 = vmatprep.subr.mxu0 %v258
  %326 = vmatpush1.msra.mxu0 %v257
  %327 = vmatprep.subr.mxu0 %v255
  %328 = vmatpush1.msra.mxu0 %v254
  %329 = vmatprep.subr.mxu0 %v252
  %330 = vmatpush1.msra.mxu0 %v251
  %331 = vmatprep.subr.mxu0 %v249
  %332 = vmatpush1.msra.mxu0 %v248
  %333 = vmatprep.subr.mxu0 0.0
  %334 = vmatpush2.msra.mxu0 0.0
  %335 = vmatprep.subr.mxu0 0.0
  %336 = vmatpush2.msra.mxu0 0.0
  %337 = vmatprep.subr.mxu0 0.0
  %338 = vmatpush2.msra.mxu0 0.0
  %339 = vmatprep.subr.mxu0 0.0
  %340 = vmatpush2.msra.mxu0 0.0
  %341 = vmatprep.subr.mxu0 0.0
  %342 = vmatpush2.msra.mxu0 0.0
  %343 = vmatprep.subr.mxu0 0.0
  %344 = vmatpush2.msra.mxu0 0.0
  %345 = vmatprep.subr.mxu0 0.0
  %346 = vmatpush2.msra.mxu0 0.0
  %347 = vmatprep.subr.mxu0 0.0
  %348 = vmatpush2.msra.mxu0 0.0
  %349 = vmatprep.subr.mxu0 0.0
  %350 = vmatpush2.msra.mxu0 0.0
  %351 = vmatprep.subr.mxu0 0.0
  %352 = vmatpush2.msra.mxu0 0.0
  %353 = vmatprep.subr.mxu0 0.0
  %354 = vmatpush2.msra.mxu0 0.0
  %355 = vmatprep.subr.mxu0 0.0
  %356 = vmatpush2.msra.mxu0 0.0
  %357 = vmatprep.subr.mxu0 0.0
  %358 = vmatpush2.msra.mxu0 0.0
  %359 = vmatprep.subr.mxu0 0.0
  %360 = vmatpush2.msra.mxu0 0.0
  %361 = vmatprep.subr.mxu0 0.0
  %362 = vmatpush2.msra.mxu0 0.0
  %363 = vmatprep.subr.mxu0 0.0
  %364 = vmatpush2.msra.mxu0 0.0
  %365 = vmatprep.mubr.f32.mxu0 0.0
  %366 = vmatmul.mubr.f32.gmra.mxu0 %v290
  %v367 = vpop.f32.mrf.mxu0
  %v368 = vadd.f32 %v271, %v367
  %v369 = vpop.f32.mrf.mxu0
  %v370 = vadd.f32 %v271, %v369
  %371 = vmatprep.mubr.f32.mxu0 0.0
  %372 = vmatmul.mubr.f32.gmra.mxu0 %v293
  %v373 = vpop.f32.mrf.mxu0
  %v374 = vadd.f32 %v276, %v373
  %v375 = vpop.f32.mrf.mxu0
  %v376 = vadd.f32 %v276, %v375
  %377 = vmatprep.mubr.f32.mxu0 0.0
  %378 = vmatmul.mubr.f32.gmra.mxu0 %v296
  %v379 = vpop.f32.mrf.mxu0
  %v380 = vadd.f32 %v281, %v379
  %v381 = vpop.f32.mrf.mxu0
  %v382 = vadd.f32 %v281, %v381
  %383 = vmatprep.mubr.f32.mxu0 0.0
  %384 = vmatmul.mubr.f32.gmra.mxu0 %v299
  %v385 = vpop.f32.mrf.mxu0
  %v386 = vadd.f32 %v286, %v385
  %v387 = vpop.f32.mrf.mxu0
  %v388 = vadd.f32 %v286, %v387
  %389 = vdwg.mxu0
  %390 = vmatprep.subr.mxu0 0.0
  %391 = vmatpush1.msra.mxu0 0.0
  %392 = vmatprep.subr.mxu0 0.0
  %393 = vmatpush1.msra.mxu0 0.0
  %394 = vmatprep.subr.mxu0 0.0
  %395 = vmatpush1.msra.mxu0 0.0
  %396 = vmatprep.subr.mxu0 0.0
  %397 = vmatpush1.msra.mxu0 0.0
  %398 = vmatprep.subr.mxu0 0.0
  %399 = vmatpush1.msra.mxu0 0.0
  %400 = vmatprep.subr.mxu0 0.0
  %401 = vmatpush1.msra.mxu0 0.0
  %402 = vmatprep.subr.mxu0 0.0
  %403 = vmatpush1.msra.mxu0 0.0
  %404 = vmatprep.subr.mxu0 0.0
  %405 = vmatpush1.msra.mxu0 0.0
  %406 = vmatprep.subr.mxu0 0.0
  %407 = vmatpush1.msra.mxu0 0.0
  %408 = vmatprep.subr.mxu0 0.0
  %409 = vmatpush1.msra.mxu0 0.0
  %410 = vmatprep.subr.mxu0 0.0
  %411 = vmatpush1.msra.mxu0 0.0
  %412 = vmatprep.subr.mxu0 0.0
  %413 = vmatpush1.msra.mxu0 0.0
  %414 = vmatprep.subr.mxu0 0.0
  %415 = vmatpush1.msra.mxu0 %v259
  %416 = vmatprep.subr.mxu0 0.0
  %417 = vmatpush1.msra.mxu0 %v256
  %418 = vmatprep.subr.mxu0 0.0
  %419 = vmatpush1.msra.mxu0 %v253
  %420 = vmatprep.subr.mxu0 0.0
  %421 = vmatpush1.msra.mxu0 %v250
  %422 = vmatprep.subr.mxu0 0.0
  %423 = vmatpush2.msra.mxu0 0.0
  %424 = vmatprep.subr.mxu0 0.0
  %425 = vmatpush2.msra.mxu0 0.0
  %426 = vmatprep.subr.mxu0 0.0
  %427 = vmatpush2.msra.mxu0 0.0
  %428 = vmatprep.subr.mxu0 0.0
  %429 = vmatpush2.msra.mxu0 0.0
  %430 = vmatprep.subr.mxu0 0.0
  %431 = vmatpush2.msra.mxu0 0.0
  %432 = vmatprep.subr.mxu0 0.0
  %433 = vmatpush2.msra.mxu0 0.0
  %434 = vmatprep.subr.mxu0 0.0
  %435 = vmatpush2.msra.mxu0 0.0
  %436 = vmatprep.subr.mxu0 0.0
  %437 = vmatpush2.msra.mxu0 0.0
  %438 = vmatprep.subr.mxu0 0.0
  %439 = vmatpush2.msra.mxu0 0.0
  %440 = vmatprep.subr.mxu0 0.0
  %441 = vmatpush2.msra.mxu0 0.0
  %442 = vmatprep.subr.mxu0 0.0
  %443 = vmatpush2.msra.mxu0 0.0
  %444 = vmatprep.subr.mxu0 0.0
  %445 = vmatpush2.msra.mxu0 0.0
  %446 = vmatprep.subr.mxu0 0.0
  %447 = vmatpush2.msra.mxu0 0.0
  %448 = vmatprep.subr.mxu0 0.0
  %449 = vmatpush2.msra.mxu0 0.0
  %450 = vmatprep.subr.mxu0 0.0
  %451 = vmatpush2.msra.mxu0 0.0
  %452 = vmatprep.subr.mxu0 0.0
  %453 = vmatpush2.msra.mxu0 0.0
  %454 = vmatprep.mubr.f32.mxu0 0.0
  %455 = vmatmul.mubr.f32.gmra.mxu0 %v290
  %v456 = vpop.f32.mrf.mxu0
  %v457 = vadd.f32 %v271, %v456
  %v458 = vpop.f32.mrf.mxu0
  %459 = vmatprep.mubr.f32.mxu0 0.0
  %460 = vmatmul.mubr.f32.gmra.mxu0 %v293
  %v461 = vpop.f32.mrf.mxu0
  %v462 = vadd.f32 %v276, %v461
  %v463 = vpop.f32.mrf.mxu0
  %464 = vmatprep.mubr.f32.mxu0 0.0
  %465 = vmatmul.mubr.f32.gmra.mxu0 %v296
  %v466 = vpop.f32.mrf.mxu0
  %v467 = vadd.f32 %v281, %v466
  %v468 = vpop.f32.mrf.mxu0
  %469 = vmatprep.mubr.f32.mxu0 0.0
  %470 = vmatmul.mubr.f32.gmra.mxu0 %v299
  %v471 = vpop.f32.mrf.mxu0
  %v472 = vadd.f32 %v286, %v471
  %v473 = vpop.f32.mrf.mxu0
  %474 = vdwg.mxu0
  %v475 = vmax.f32 %v368, 0.0
  %v476 = vmax.f32 %v370, 0.0
  %v477 = vmax.f32 %v457, 0.0
  %v478 = vmax.f32 %v374, 0.0
  %v479 = vmax.f32 %v376, 0.0
  %v480 = vmax.f32 %v462, 0.0
  %v481 = vmax.f32 %v380, 0.0
  %v482 = vmax.f32 %v382, 0.0
  %v483 = vmax.f32 %v467, 0.0
  %v484 = vmax.f32 %v386, 0.0
  %v485 = vmax.f32 %v388, 0.0
  %v486 = vmax.f32 %v472, 0.0
  %v487 = vld [vmem:[%s5] sm:$0xff]
  %v488 = vld [vmem:[%s5 + $0x8] sm:$0xff]
  %v489 = vld [vmem:[%s5 + $0x10] sm:$0xff]
  %v490 = vld [vmem:[%s5 + $0x18] sm:$0xff]
  %492 = vset.pattern.permute.xlu0 0
  %493 = vperm.xlu0 %492, %v487
  %v494 = vpop.permute.xlu0 %493
  %497 = vset.pattern.permute.xlu0 0
  %498 = vperm.xlu0 %497, %v488
  %v499 = vpop.permute.xlu0 %498
  %502 = vset.pattern.permute.xlu0 0
  %503 = vperm.xlu0 %502, %v489
  %v504 = vpop.permute.xlu0 %503
  %507 = vset.pattern.permute.xlu0 0
  %508 = vperm.xlu0 %507, %v490
  %v509 = vpop.permute.xlu0 %508
  %v511 = vmul.f32 %v475, %v494
  %v512 = vmul.f32 %v476, %v494
  %v513 = vmul.f32 %v477, %v494
  %v514 = vmul.f32 %v478, %v499
  %v515 = vmul.f32 %v479, %v499
  %v516 = vmul.f32 %v480, %v499
  %v517 = vmul.f32 %v481, %v504
  %v518 = vmul.f32 %v482, %v504
  %v519 = vmul.f32 %v483, %v504
  %v520 = vmul.f32 %v484, %v509
  %v521 = vmul.f32 %v485, %v509
  %v522 = vmul.f32 %v486, %v509
  %v523 = vadd.f32 %v511, %v514
  %v524 = vadd.f32 %v523, %v517
  %v525 = vadd.f32 %v524, %v520
  %v526 = vrot.slane %v525, 4
  %v527 = vadd.f32 %v525, %v526
  %v528 = vrot.slane %v527, 2
  %v529 = vadd.f32 %v527, %v528
  %v530 = vrot.slane %v529, 1
  %v531 = vadd.f32 %v529, %v530
  %v532 = vadd.f32 %v512, %v515
  %v533 = vadd.f32 %v532, %v518
  %v534 = vadd.f32 %v533, %v521
  %v535 = vrot.slane %v534, 4
  %v536 = vadd.f32 %v534, %v535
  %v537 = vrot.slane %v536, 2
  %v538 = vadd.f32 %v536, %v537
  %v539 = vrot.slane %v538, 1
  %v540 = vadd.f32 %v538, %v539
  %v541 = vadd.f32 %v513, %v516
  %v542 = vadd.f32 %v541, %v519
  %v543 = vadd.f32 %v542, %v522
  %v544 = vrot.slane %v543, 4
  %v545 = vadd.f32 %v543, %v544
  %v546 = vrot.slane %v545, 2
  %v547 = vadd.f32 %v545, %v546
  %v548 = vrot.slane %v547, 1
  %v549 = vadd.f32 %v547, %v548
  %s550 = sld [smem:[#allocation2]]
  %v551 = vstv %s550
  %v552 = vadd.f32 %v531, %v551
  %v553 = vadd.f32 %v540, %v551
  %v554 = vadd.f32 %v549, %v551
  %v558 = vcombine.low %v552, %v553
  %v560 = vunpack.c.l.s4 1966171168
  %v561 = vunpack.c.0.s8 %v560
  %v562 = vlaneseq
  %v563 = vshrl.u32 %v562, 7
  %v564 = vsub.s32 %v561, %v563
  %v565 = vrot.slane %v558, %v564
  %v567 = vunpack.c.l.s4 1966171168
  %v568 = vunpack.c.0.s8 %v567
  %v569 = vlaneseq
  %v570 = vshrl.u32 %v569, 7
  %v571 = vsub.s32 %v568, %v570
  %v572 = vrot.slane %v554, %v571
  %v573 = vcombine.low %v565, %v572
  %v575 = vunpack.c.l.s4 1966171168
  %v576 = vunpack.c.0.s8 %v575
  %v577 = vlaneseq
  %v578 = vshrl.u32 %v577, 7
  %v579 = vsub.s32 %v576, %v578
  %v580 = vrot.slane %v573, %v579
  %v582 = vlaneseq
  %vm583 = vcmp.ge.s32.totalorder %v582, 0
  %vm584 = vcmp.lt.s32.totalorder %v582, 384
  %vm585 = vmand %vm583, %vm584
  %586 = vst.msk [vmem:[%s7] sm:$0x7] %vm585, %v580
  // Predicated region
  $region30: #{critic_forward.1} parent=0 // pred_check
    _
  $region31: #{critic_forward.1} parent=0 // pred_check_branch
    %588 = sbr.rel (0) target = $region33
  $region32: #{critic_forward.1} parent=0 // pred_region
    _
  $region33: #{critic_forward.1} parent=0 // pred_fallthru
    _
  // Predicated region
  $region34: #{critic_forward.1} parent=0 // pred_check
    _
  $region35: #{critic_forward.1} parent=0 // pred_check_branch
    %590 = sbr.rel (0) target = $region37
  $region36: #{critic_forward.1} parent=0 // pred_region
    _
  $region37: #{critic_forward.1} parent=0 // pred_fallthru
    _

</llo_original>
